<compile_context>
chip_gen: v7x
topology: tpu7x:2x2x1
jax: 0.10.0
libtpu: 0.0.40
codegen_flags: <defaults>
</compile_context>

<pallas_src>
import functools

import jax
import jax.numpy as jnp
from jax.experimental import pallas as pl
from jax.experimental.pallas import tpu as pltpu


def _cdiv(a, b):
    return -(-a // b)


# --------------------------------------------------------------------------
# kernels
# --------------------------------------------------------------------------

def _pa_kernel_vpu(w_ref, b_ref, x_ref, o_ref, *, C):
    """Small-C path: unrolled VPU FMAs, pixels on the lane axis.

    w_ref : (C, C) f32, resident (conv weight, (out, in))
    b_ref : (C, 1) f32, resident
    x_ref : (1, C, TP) input tile  (channels on sublanes, pixels on lanes)
    o_ref : (1, C, TP) output tile
    """
    x = x_ref[0]                               # (C, TP)
    xf = x.astype(jnp.float32)
    w = w_ref[...]                             # (C, C) f32
    y = b_ref[...]                             # (C, 1) -> broadcasts over lanes
    for ci in range(C):
        # column ci of W (C,1) * input-channel row ci (1,TP) -> (C,TP)
        y = y + w[:, ci:ci + 1] * xf[ci:ci + 1, :]
    # sigmoid with the divide on the EUP slot (VALU is the busy slot here)
    attn = pl.reciprocal(1.0 + jnp.exp(-y), approx=True)
    o_ref[0] = (xf * attn).astype(o_ref.dtype)


def _pa_kernel_mxu(w_ref, b_ref, x_ref, o_ref):
    """General path: y = W @ x_block on the MXU, pixels stay on the lane axis.

    x and W are consumed in their native dtype (bf16 stays bf16); the matmul
    accumulates in f32 and the epilogue (bias + sigmoid + x*attn) is f32.
    """
    x = x_ref[0]                               # (C, TP), native dtype
    y = jnp.dot(w_ref[...], x, preferred_element_type=jnp.float32) + b_ref[...]
    attn = jax.nn.sigmoid(y)                   # f32
    o_ref[0] = (x.astype(jnp.float32) * attn).astype(o_ref.dtype)


# --------------------------------------------------------------------------
# wrapper
# --------------------------------------------------------------------------

def pa_forward(x_nchw, weight, bias, *, block_bytes=4 * 1024 * 1024,
               vpu_c_threshold=8):
    """PA forward.

    x_nchw : (N, C, H, W)
    weight : (C, C, 1, 1)   -- PyTorch Conv2d(nf, nf, 1) weight (out, in, 1, 1)
    bias   : (C,)
    """
    N, C, H, W = x_nchw.shape
    HW = H * W
    x_dtype = x_nchw.dtype
    itemsize = jnp.dtype(x_dtype).itemsize

    use_vpu = C <= vpu_c_threshold

    # Weight dtype: f32 for the VPU path; for the MXU path keep 16-bit float
    # activations' dtype (native MXU rate, halves the resident W footprint).
    if (not use_vpu) and jnp.issubdtype(x_dtype, jnp.floating) and itemsize == 2:
        w_dtype = x_dtype
    else:
        w_dtype = jnp.float32

    x3 = x_nchw.reshape(N, C, HW)                      # free view, no transpose
    w2 = weight.reshape(C, C).astype(w_dtype)          # (out, in): y = W @ x
    b2 = bias.reshape(C, 1).astype(jnp.float32)

    # --- pixel tile: lane-dense multiple of 128, sized by BYTES ------------
    hw_pad = _cdiv(HW, 128) * 128
    tp = max(128, (block_bytes // (C * itemsize)) // 128 * 128)
    tp = min(tp, hw_pad)                               # never exceed padded row
    # Keep at least ~4 grid blocks so both v7x TensorCores get work.
    while tp > 128 and N * _cdiv(HW, tp) < 4:
        tp = max(128, ((tp // 2) // 128) * 128)
    if HW < 128:
        tp = HW                                        # block dim == full dim -> legal

    grid = (N, _cdiv(HW, tp))                          # partial tail block is fine
                                                       # (purely per-lane math)

    # Explicit scoped-VMEM budget: double-buffered x/out blocks + W/b with
    # headroom.  Default scoped limits (16 MiB v5e / 32 MiB v6e,v7x) are too
    # tight for 4 MiB blocks; cap well below v7x's 64 MiB physical VMEM.
    blk_bytes = C * tp * itemsize
    w_bytes = C * C * jnp.dtype(w_dtype).itemsize
    need = 4 * blk_bytes + 2 * (w_bytes + C * 4)
    vmem_limit = int(min(56 * 2 ** 20, max(16 * 2 ** 20, need + (8 << 20))))

    kernel = functools.partial(_pa_kernel_vpu, C=C) if use_vpu else _pa_kernel_mxu

    out3 = pl.pallas_call(
        kernel,
        out_shape=jax.ShapeDtypeStruct((N, C, HW), x_dtype),
        grid_spec=pltpu.PrefetchScalarGridSpec(
            num_scalar_prefetch=0,
            grid=grid,
            in_specs=[
                pl.BlockSpec((C, C), lambda n, p: (0, 0)),         # W (resident)
                pl.BlockSpec((C, 1), lambda n, p: (0, 0)),         # b (resident)
                pl.BlockSpec((1, C, tp), lambda n, p: (n, 0, p)),  # x tile
            ],
            out_specs=pl.BlockSpec((1, C, tp), lambda n, p: (n, 0, p)),
        ),
        compiler_params=pltpu.CompilerParams(
            dimension_semantics=("parallel", "parallel"),
            vmem_limit_bytes=vmem_limit),
    )(w2, b2, x3)

    return out3.reshape(N, C, H, W)


def pa_reference(x_nchw, weight, bias):
    # pure-JAX reference of the PyTorch forward (1x1 conv + sigmoid + mul)
    N, C, H, W = x_nchw.shape
    w2 = weight.reshape(C, C)
    y = jnp.einsum('oc,nchw->nohw', w2, x_nchw) + bias.reshape(1, C, 1, 1)
    return x_nchw * jax.nn.sigmoid(y)


if __name__ == "__main__":
    key = jax.random.PRNGKey(0)
    k_x, k_w, k_b = jax.random.split(key, 3)

    N, nf, Hs, Ws = 2, 4, 16, 16

    # Deterministic parameter init mimicking nn.Conv2d default (uniform ±1/sqrt(fan_in))
    fan_in = nf * 1 * 1
    bound = 1.0 / (fan_in ** 0.5)
    weight = jax.random.uniform(k_w, (nf, nf, 1, 1), jnp.float32, -bound, bound)
    bias = jax.random.uniform(k_b, (nf,), jnp.float32, -bound, bound)

    x = jax.random.normal(k_x, (N, nf, Hs, Ws), jnp.float32)

    out = jax.block_until_ready(pa_forward(x, weight, bias))
    ref = pa_reference(x, weight, bias)

    assert out.shape == (N, nf, Hs, Ws)
    # Tolerance relaxed slightly: the small-C path uses the EUP approximate
    # reciprocal for the sigmoid divide.
    assert jnp.allclose(out, ref, atol=5e-3, rtol=5e-3), "mismatch vs reference"

    print("KERNEL_OK")
</pallas_src>

<mosaic_0001>
module attributes {stable_mosaic.version = 11 : i64} {
  func.func @_pa_kernel_vpu(%arg0: i32, %arg1: i32, %arg2: memref<4x4xf32, #tpu.memory_space<vmem>>, %arg3: memref<4x1xf32, #tpu.memory_space<vmem>>, %arg4: memref<1x4x128xf32, #tpu.memory_space<vmem>>, %arg5: memref<1x4x128xf32, #tpu.memory_space<vmem>>) attributes {dimension_semantics = [#tpu.dimension_semantics<parallel>, #tpu.dimension_semantics<parallel>], iteration_bounds = array<i64: 2, 2>, scalar_prefetch = 0 : i64, scratch_operands = 0 : i64, tpu.core_type = #tpu.core_type<tc>, window_params = [{pipeline_mode = #tpu.pipeline_mode<synchronous>, transform_indices = @transform_0, window_bounds = array<i64: 4, 4>}, {pipeline_mode = #tpu.pipeline_mode<synchronous>, transform_indices = @transform_1, window_bounds = array<i64: 4, 1>}, {transform_indices = @transform_2, window_bounds = array<i64: 1, 4, 128>}, {transform_indices = @transform_3, window_bounds = array<i64: 1, 4, 128>}]} {
    %c0 = arith.constant 0 : index
    %c0_0 = arith.constant 0 : index
    %c0_1 = arith.constant 0 : index
    %0 = vector.load %arg4[%c0, %c0_0, %c0_1] : memref<1x4x128xf32, #tpu.memory_space<vmem>>, vector<1x4x128xf32>
    %1 = vector.shape_cast %0 : vector<1x4x128xf32> to vector<4x128xf32>
    %c0_2 = arith.constant 0 : index
    %c0_3 = arith.constant 0 : index
    %2 = vector.load %arg2[%c0_2, %c0_3] : memref<4x4xf32, #tpu.memory_space<vmem>>, vector<4x4xf32>
    %c0_4 = arith.constant 0 : index
    %c0_5 = arith.constant 0 : index
    %3 = vector.load %arg3[%c0_4, %c0_5] : memref<4x1xf32, #tpu.memory_space<vmem>>, vector<4x1xf32>
    %4 = vector.extract_strided_slice %2 {offsets = [0, 0], sizes = [4, 1], strides = [1, 1]} : vector<4x4xf32> to vector<4x1xf32>
    %5 = vector.extract_strided_slice %1 {offsets = [0, 0], sizes = [1, 128], strides = [1, 1]} : vector<4x128xf32> to vector<1x128xf32>
    %6 = vector.broadcast %4 : vector<4x1xf32> to vector<4x128xf32>
    %7 = vector.broadcast %5 : vector<1x128xf32> to vector<4x128xf32>
    %8 = arith.mulf %6, %7 : vector<4x128xf32>
    %9 = vector.broadcast %3 : vector<4x1xf32> to vector<4x128xf32>
    %10 = arith.addf %9, %8 : vector<4x128xf32>
    %11 = vector.extract_strided_slice %2 {offsets = [0, 1], sizes = [4, 1], strides = [1, 1]} : vector<4x4xf32> to vector<4x1xf32>
    %12 = vector.extract_strided_slice %1 {offsets = [1, 0], sizes = [1, 128], strides = [1, 1]} : vector<4x128xf32> to vector<1x128xf32>
    %13 = vector.broadcast %11 : vector<4x1xf32> to vector<4x128xf32>
    %14 = vector.broadcast %12 : vector<1x128xf32> to vector<4x128xf32>
    %15 = arith.mulf %13, %14 : vector<4x128xf32>
    %16 = arith.addf %10, %15 : vector<4x128xf32>
    %17 = vector.extract_strided_slice %2 {offsets = [0, 2], sizes = [4, 1], strides = [1, 1]} : vector<4x4xf32> to vector<4x1xf32>
    %18 = vector.extract_strided_slice %1 {offsets = [2, 0], sizes = [1, 128], strides = [1, 1]} : vector<4x128xf32> to vector<1x128xf32>
    %19 = vector.broadcast %17 : vector<4x1xf32> to vector<4x128xf32>
    %20 = vector.broadcast %18 : vector<1x128xf32> to vector<4x128xf32>
    %21 = arith.mulf %19, %20 : vector<4x128xf32>
    %22 = arith.addf %16, %21 : vector<4x128xf32>
    %23 = vector.extract_strided_slice %2 {offsets = [0, 3], sizes = [4, 1], strides = [1, 1]} : vector<4x4xf32> to vector<4x1xf32>
    %24 = vector.extract_strided_slice %1 {offsets = [3, 0], sizes = [1, 128], strides = [1, 1]} : vector<4x128xf32> to vector<1x128xf32>
    %25 = vector.broadcast %23 : vector<4x1xf32> to vector<4x128xf32>
    %26 = vector.broadcast %24 : vector<1x128xf32> to vector<4x128xf32>
    %27 = arith.mulf %25, %26 : vector<4x128xf32>
    %28 = arith.addf %22, %27 : vector<4x128xf32>
    %cst = arith.constant 0.000000e+00 : f32
    %29 = vector.broadcast %cst : f32 to vector<4x128xf32>
    %30 = arith.subf %29, %28 : vector<4x128xf32>
    %31 = math.exp %30 : vector<4x128xf32>
    %cst_6 = arith.constant 1.000000e+00 : f32
    %32 = vector.broadcast %cst_6 : f32 to vector<4x128xf32>
    %33 = arith.addf %32, %31 : vector<4x128xf32>
    %34 = tpu.reciprocal %33 {approx = true} : vector<4x128xf32> -> vector<4x128xf32>
    %35 = arith.mulf %1, %34 : vector<4x128xf32>
    %c0_7 = arith.constant 0 : index
    %c0_8 = arith.constant 0 : index
    %c0_9 = arith.constant 0 : index
    %36 = vector.load %arg5[%c0_7, %c0_8, %c0_9] : memref<1x4x128xf32, #tpu.memory_space<vmem>>, vector<1x4x128xf32>
    %37 = vector.shape_cast %36 : vector<1x4x128xf32> to vector<4x128xf32>
    %38 = vector.shape_cast %35 : vector<4x128xf32> to vector<1x4x128xf32>
    tpu.vector_store %arg5[%c0_7, %c0_8, %c0_9], %38 {strides = array<i32>} : memref<1x4x128xf32, #tpu.memory_space<vmem>>, vector<1x4x128xf32>,
    return
  }
  func.func @transform_0(%arg0: i32, %arg1: i32) -> (i32, i32) {
    %c0_i32 = arith.constant 0 : i32
    %c0_i32_0 = arith.constant 0 : i32
    %c0_i32_1 = arith.constant 0 : i32
    return %c0_i32, %c0_i32_0 : i32, i32
  }
  func.func @transform_1(%arg0: i32, %arg1: i32) -> (i32, i32) {
    %c0_i32 = arith.constant 0 : i32
    %c0_i32_0 = arith.constant 0 : i32
    %c0_i32_1 = arith.constant 0 : i32
    return %c0_i32, %c0_i32_0 : i32, i32
  }
  func.func @transform_2(%arg0: i32, %arg1: i32) -> (i32, i32, i32) {
    %c0_i32 = arith.constant 0 : i32
    %c0_i32_0 = arith.constant 0 : i32
    return %arg0, %c0_i32, %arg1 : i32, i32, i32
  }
  func.func @transform_3(%arg0: i32, %arg1: i32) -> (i32, i32, i32) {
    %c0_i32 = arith.constant 0 : i32
    %c0_i32_0 = arith.constant 0 : i32
    return %arg0, %c0_i32, %arg1 : i32, i32, i32
  }
}

</mosaic_0001>

<llo_original>
// kernel: tpu_custom_call.1
$region0: #{tpu_custom_call.1}
  #allocation0 [shape = 'u32[]', space=smem, size = 0x4, offset = 0x4, fixed_abs, tag = 'smem constant byte address 0x4 - core index']
  #allocation1 [shape = 'u32[144,128]{1,0:T(1,128)}', space=vmem, size = 0x12000, scoped, tag = 'internal scratch']
  %s0 = inlined_call_operand.vmem [shape: f32[4,4], index: 0, kind: input, shape index: {}]
  %s1 = inlined_call_operand.vmem [shape: f32[4,1], index: 1, kind: input, shape index: {}]
  %s2 = inlined_call_operand.hbm [shape: f32[2,4,256], index: 2, kind: input, shape index: {}]
  %s3 = inlined_call_operand.hbm [shape: f32[2,4,256], index: 3, kind: output, shape index: {}]
  %s4 = sld [smem:[#allocation0]]
  $region49: #{tpu_custom_call.1} parent=0
    _
  %s6 = ssub.s32 1, %s4
  %s7 = scalar_select 0, %s6, %s4
  $region1: #{tpu_custom_call.1} parent=0
    #allocation2 [shape = 'u8[4096]{0}', space=vmem, size = 0x1000, scoped, tag = 'input window, operand 2']
    #allocation3 [shape = 's32[2]{0}', space=sflag, size = 0x8, scoped, tag = 'scoped memory for tpu_custom_call.1']
    #allocation4 [shape = 's32[2]{0}', space=sflag, size = 0x8, scoped, tag = 'scoped memory for tpu_custom_call.1']
    #allocation5 [shape = 'u8[4096]{0}', space=vmem, size = 0x1000, scoped, tag = 'output window, operand 0']
    %8 = vsyncpa [#allocation3], 0
    %s9 = scalar_lea.sflag [#allocation3], 1
    %10 = vsyncpa %s9, 0
    %11 = vsyncpa [#allocation4], 0
    %s12 = scalar_lea.sflag [#allocation4], 1
    %13 = vsyncpa %s12, 0
    loop: start=0, step=1, limit=6
    $region2: #{tpu_custom_call.1} parent=1 // loop_pre_header
      _
    $region3: #{tpu_custom_call.1} parent=1 // loop_header
      %s15 = sphi 0, %s19
      %p16 = scmp.ge.s32.totalorder %s15, 6
      %s22 = sphi 0, %s34
      %s23 = sphi 0, %s30
      %s24 = sphi 0, %s22
      %s25 = sphi 0, %s23
      %s26 = sphi 0, %s24
      %s27 = sphi 0, %s25
      %s35 = sphi 0, %s35
      %s37 = sphi 0, %s35
      %s38 = sphi 0, %s37
      %s52 = sphi 0, %s38
      %s56 = sphi 0, %s56
      %s58 = sphi 0, %s56
      %s59 = sphi 0, %s58
      %s73 = sphi 0, %s59
      %s81 = sphi 0, %s83
      %s84 = sphi 0, %s81
      %s85 = sphi 0, %s84
      %s101 = sphi 0, %s85
      %s109 = sphi 0, %s111
      %s112 = sphi 0, %s109
      %s113 = sphi 0, %s112
      %s129 = sphi 0, %s113
    $region4: #{tpu_custom_call.1} parent=1 // loop_header_branch
      %18 = sbr.rel (%p16) target = $region8
    $region5: #{tpu_custom_call.1} parent=1 // loop_body
      %s20 = ssub.s32 %s15, 1
      %s21 = ssub.s32 %s15, 2
      %s28 = sadd.s32 1, %s23
      %p29 = scmp.ge.s32.totalorder %s28, 2
      %s30 = scalar_select %p29, 0, %s28
      %s31 = sadd.s32 1, %s22
      %s32 = scalar_select %p29, %s31, %s22
      %p33 = scmp.ge.s32.totalorder %s32, 2
      %s34 = scalar_select %p33, 0, %s32
      %s36 = sadd.s32 %s35, 1
      %p39 = scmp.eq.s32.totalorder %s15, 3
      %p40 = scmp.ne.s32.totalorder %s35, %s37
      %p41 = scmp.eq.s32.totalorder %s15, 0
      %p42 = por %p40, %p41
      %p43 = scmp.ne.s32.totalorder %s35, %s37
      %p44 = scmp.eq.s32.totalorder %s20, 3
      %p45 = por %p43, %p44
      %p46 = scmp.ne.s32.totalorder %s37, %s38
      %p47 = scmp.eq.s32.totalorder %s20, 0
      %p48 = por %p46, %p47
      %p49 = scmp.ne.s32.totalorder %s37, %s38
      %p50 = scmp.eq.s32.totalorder %s21, 3
      %p51 = por %p49, %p50
      %p53 = scmp.ne.s32.totalorder %s38, %s52
      %p54 = scmp.eq.s32.totalorder %s21, 0
      %p55 = por %p53, %p54
      %s57 = sadd.s32 %s56, 1
      %p60 = scmp.eq.s32.totalorder %s15, 3
      %p61 = scmp.ne.s32.totalorder %s56, %s58
      %p62 = scmp.eq.s32.totalorder %s15, 0
      %p63 = por %p61, %p62
      %p64 = scmp.ne.s32.totalorder %s56, %s58
      %p65 = scmp.eq.s32.totalorder %s20, 3
      %p66 = por %p64, %p65
      %p67 = scmp.ne.s32.totalorder %s58, %s59
      %p68 = scmp.eq.s32.totalorder %s20, 0
      %p69 = por %p67, %p68
      %p70 = scmp.ne.s32.totalorder %s58, %s59
      %p71 = scmp.eq.s32.totalorder %s21, 3
      %p72 = por %p70, %p71
      %p74 = scmp.ne.s32.totalorder %s59, %s73
      %p75 = scmp.eq.s32.totalorder %s21, 0
      %p76 = por %p74, %p75
      %s77 = ssub.s32 %s22, %s34
      %s78 = ssub.s32 %s23, %s30
      %s79 = sor.u32 %s77, %s78
      %p80 = scmp.eq.s32.totalorder %s79, 0
      %s82 = sadd.s32 %s81, 1
      %s83 = scalar_select %p80, %s81, %s82
      %p86 = pneg %p80
      %p87 = scmp.eq.s32.totalorder %s15, 3
      %p88 = por %p86, %p87
      %p89 = scmp.ne.s32.totalorder %s81, %s84
      %p90 = scmp.eq.s32.totalorder %s15, 0
      %p91 = por %p89, %p90
      %p92 = scmp.ne.s32.totalorder %s81, %s84
      %p93 = scmp.eq.s32.totalorder %s20, 3
      %p94 = por %p92, %p93
      %p95 = scmp.ne.s32.totalorder %s84, %s85
      %p96 = scmp.eq.s32.totalorder %s20, 0
      %p97 = por %p95, %p96
      %p98 = scmp.ne.s32.totalorder %s84, %s85
      %p99 = scmp.eq.s32.totalorder %s21, 3
      %p100 = por %p98, %p99
      %p102 = scmp.ne.s32.totalorder %s85, %s101
      %p103 = scmp.eq.s32.totalorder %s21, 0
      %p104 = por %p102, %p103
      %s105 = ssub.s32 %s22, %s34
      %s106 = ssub.s32 %s23, %s30
      %s107 = sor.u32 %s105, %s106
      %p108 = scmp.eq.s32.totalorder %s107, 0
      %s110 = sadd.s32 %s109, 1
      %s111 = scalar_select %p108, %s109, %s110
      %p114 = pneg %p108
      %p115 = scmp.eq.s32.totalorder %s15, 3
      %p116 = por %p114, %p115
      %p117 = scmp.ne.s32.totalorder %s109, %s112
      %p118 = scmp.eq.s32.totalorder %s15, 0
      %p119 = por %p117, %p118
      %p120 = scmp.ne.s32.totalorder %s109, %s112
      %p121 = scmp.eq.s32.totalorder %s20, 3
      %p122 = por %p120, %p121
      %p123 = scmp.ne.s32.totalorder %s112, %s113
      %p124 = scmp.eq.s32.totalorder %s20, 0
      %p125 = por %p123, %p124
      %p126 = scmp.ne.s32.totalorder %s112, %s113
      %p127 = scmp.eq.s32.totalorder %s21, 3
      %p128 = por %p126, %p127
      %p130 = scmp.ne.s32.totalorder %s113, %s129
      %p131 = scmp.eq.s32.totalorder %s21, 0
      %p132 = por %p130, %p131
      %p133 = scmp.le.s32.totalorder 1, %s15
      %p134 = scmp.lt.s32.totalorder %s15, 5
      %p135 = pnand %p133, %p134
      %p136 = pneg %p135
      // Predicated region
      $region9: #{tpu_custom_call.1} parent=5 // pred_check
        _
      $region10: #{tpu_custom_call.1} parent=5 // pred_check_branch
        %138 = sbr.rel (%p135) target = $region12
      $region11: #{tpu_custom_call.1} parent=5 // pred_region
        %s139 = ssub.s32 %s15, 1
        // Predicated region
        $region13: #{tpu_custom_call.1} parent=11 // pred_check
          %p140 = pneg %p48
        $region14: #{tpu_custom_call.1} parent=11 // pred_check_branch
          %142 = sbr.rel (%p140) target = $region16
        $region15: #{tpu_custom_call.1} parent=11 // pred_region
          _
        $region16: #{tpu_custom_call.1} parent=11 // pred_fallthru
          _
        // Predicated region
        $region17: #{tpu_custom_call.1} parent=11 // pred_check
          %p143 = pneg %p69
        $region18: #{tpu_custom_call.1} parent=11 // pred_check_branch
          %145 = sbr.rel (%p143) target = $region20
        $region19: #{tpu_custom_call.1} parent=11 // pred_region
          _
        $region20: #{tpu_custom_call.1} parent=11 // pred_fallthru
          _
      $region12: #{tpu_custom_call.1} parent=5 // pred_fallthru
        _
      %p146 = scmp.lt.s32.totalorder %s15, 4
      // Predicated region
      $region21: #{tpu_custom_call.1} parent=5 // pred_check
        %p147 = pneg %p146
      $region22: #{tpu_custom_call.1} parent=5 // pred_check_branch
        %149 = sbr.rel (%p147) target = $region24
      $region23: #{tpu_custom_call.1} parent=5 // pred_region
        // Predicated region
        $region25: #{tpu_custom_call.1} parent=23 // pred_check
          %p150 = pneg %p91
        $region26: #{tpu_custom_call.1} parent=23 // pred_check_branch
          %152 = sbr.rel (%p150) target = $region28
        $region27: #{tpu_custom_call.1} parent=23 // pred_region
          %s153 = sand.u32 %s81, 1
          %s154 = scalar_lea.sflag [#allocation3], %s153
          %s155 = sand.u32 %s81, 1
          %s156 = smul.addr %s155, 4
          %s157 = scalar_lea.vmem [#allocation2], %s156
          %s159 = ssub.s32 64, 64
          %160 = vsyncadd %s154, %s159
          %s161 = smul.addr %s22, 2
          %s162 = sadd.s32 %s23, %s161
          %s163 = smul.addr %s162, 64
          %s164 = scalar_lea.hbm %s2, %s163
          %s166 = sshll.u32 %s157, 4
          %s167 = int_to_ptr.vmem [resolvable:$true] %s166
          %169 = dma.hbm_to_vmem [thread:$0]  %s164, 64, %s167, %s154
        $region28: #{tpu_custom_call.1} parent=23 // pred_fallthru
          _
      $region24: #{tpu_custom_call.1} parent=5 // pred_fallthru
        _
      %p170 = scmp.le.s32.totalorder 1, %s15
      %p171 = scmp.lt.s32.totalorder %s15, 5
      %p172 = pnand %p170, %p171
      %p173 = pneg %p172
      // Predicated region
      $region29: #{tpu_custom_call.1} parent=5 // pred_check
        _
      $region30: #{tpu_custom_call.1} parent=5 // pred_check_branch
        %175 = sbr.rel (%p172) target = $region32
      $region31: #{tpu_custom_call.1} parent=5 // pred_region
        %s176 = ssub.s32 %s15, 1
        %s177 = sand.u32 %s84, 1
        %s178 = scalar_lea.sflag [#allocation3], %s177
        %s179 = sand.u32 %s84, 1
        %s180 = smul.addr %s179, 4
        %s181 = scalar_lea.vmem [#allocation2], %s180
        // Predicated region
        $region33: #{tpu_custom_call.1} parent=31 // pred_check
          %p182 = pneg %p97
        $region34: #{tpu_custom_call.1} parent=31 // pred_check_branch
          %184 = sbr.rel (%p182) target = $region36
        $region35: #{tpu_custom_call.1} parent=31 // pred_region
          %185 = dma.done %s178, 64
        $region36: #{tpu_custom_call.1} parent=31 // pred_fallthru
          _
        %p186 = pneg %p48
        %p187 = pneg %p45
        %p188 = pneg %p69
        %p189 = pneg %p66
        %s190 = sand.u32 %s84, 1
        %s191 = scalar_lea.sflag [#allocation3], %s190
        %s192 = sand.u32 %s84, 1
        %s193 = smul.addr %s192, 4
        %s194 = scalar_lea.vmem [#allocation2], %s193
        %p195 = pneg %p97
        %p196 = pneg %p94
        %p197 = pneg %p125
        %p198 = pneg %p122
        %s199 = sand.u32 %s112, 1
        %s200 = scalar_lea.sflag [#allocation4], %s199
        %s201 = sand.u32 %s112, 1
        %s202 = smul.addr %s201, 4
        %s203 = scalar_lea.vmem [#allocation5], %s202
        %v204 = vld [vmem:[%s181] sm:$0xf]
        %v205 = vld [vmem:[%s0] sm:$0xf]
        %v206 = vld [vmem:[%s1] sm:$0xf]
        %208 = vset.pattern.permute.xlu0 0
        %209 = vperm.xlu0 %208, %v205
        %v210 = vpop.permute.xlu0 %209
        %v212 = vlaneseq
        %v213 = vshrl.u32 %v212, 7
        %v214 = vsub.s32 0, %v213
        %v215 = vrot.slane %v204, %v214
        %v216 = vmul.f32 %v210, %v215
        %218 = vset.pattern.permute.xlu0 0
        %219 = vperm.xlu0 %218, %v206
        %v220 = vpop.permute.xlu0 %219
        %v222 = vadd.f32 %v220, %v216
        %223 = vset.pattern.permute.xlu0 1
        %224 = vperm.xlu0 %223, %v205
        %v225 = vpop.permute.xlu0 %224
        %v227 = vlaneseq
        %v228 = vshrl.u32 %v227, 7
        %v229 = vsub.s32 1, %v228
        %v230 = vrot.slane %v204, %v229
        %v231 = vmul.f32 %v225, %v230
        %v232 = vadd.f32 %v222, %v231
        %233 = vset.pattern.permute.xlu0 2
        %234 = vperm.xlu0 %233, %v205
        %v235 = vpop.permute.xlu0 %234
        %v237 = vlaneseq
        %v238 = vshrl.u32 %v237, 7
        %v239 = vsub.s32 2, %v238
        %v240 = vrot.slane %v204, %v239
        %v241 = vmul.f32 %v235, %v240
        %v242 = vadd.f32 %v232, %v241
        %243 = vset.pattern.permute.xlu0 3
        %244 = vperm.xlu0 %243, %v205
        %v245 = vpop.permute.xlu0 %244
        %v247 = vlaneseq
        %v248 = vshrl.u32 %v247, 7
        %v249 = vsub.s32 3, %v248
        %v250 = vrot.slane %v204, %v249
        %v251 = vmul.f32 %v245, %v250
        %v252 = vadd.f32 %v242, %v251
        %v253 = vsub.f32 0.0, %v252
        %v254 = vmul.f32 %v253, 1.442695
        %v255 = vpow.pop %v254
        %v256 = vadd.f32 %v255, 1.0
        %v257 = vrcp.pop %v256
        %v258 = vmul.f32 %v204, %v257
        %259 = vst [vmem:[%s203] sm:$0xf] %v258
        %s260 = sand.u32 %s112, 1
        %s261 = scalar_lea.sflag [#allocation4], %s260
        %s262 = sand.u32 %s112, 1
        %s263 = smul.addr %s262, 4
        %s264 = scalar_lea.vmem [#allocation5], %s263
        // Predicated region
        $region37: #{tpu_custom_call.1} parent=31 // pred_check
          %p265 = pneg %p122
        $region38: #{tpu_custom_call.1} parent=31 // pred_check_branch
          %267 = sbr.rel (%p265) target = $region40
        $region39: #{tpu_custom_call.1} parent=31 // pred_region
          %s269 = ssub.s32 64, 64
          %270 = vsyncadd %s261, %s269
          %s271 = smul.addr %s24, 2
          %s272 = sadd.s32 %s25, %s271
          %s273 = smul.addr %s272, 64
          %s274 = scalar_lea.hbm %s3, %s273
          %s276 = sshll.u32 %s264, 4
          %s277 = int_to_ptr.vmem [resolvable:$true] %s276
          %279 = dma.vmem_to_hbm [thread:$0]  %s277, 64, %s274, %s261
        $region40: #{tpu_custom_call.1} parent=31 // pred_fallthru
          _
      $region32: #{tpu_custom_call.1} parent=5 // pred_fallthru
        _
      %p280 = scmp.le.s32.totalorder 2, %s15
      // Predicated region
      $region41: #{tpu_custom_call.1} parent=5 // pred_check
        %p281 = pneg %p280
      $region42: #{tpu_custom_call.1} parent=5 // pred_check_branch
        %283 = sbr.rel (%p281) target = $region44
      $region43: #{tpu_custom_call.1} parent=5 // pred_region
        %s284 = ssub.s32 %s15, 2
        // Predicated region
        $region45: #{tpu_custom_call.1} parent=43 // pred_check
          %p285 = pneg %p128
        $region46: #{tpu_custom_call.1} parent=43 // pred_check_branch
          %287 = sbr.rel (%p285) target = $region48
        $region47: #{tpu_custom_call.1} parent=43 // pred_region
          %s288 = sand.u32 %s113, 1
          %s289 = scalar_lea.sflag [#allocation4], %s288
          %s290 = sand.u32 %s113, 1
          %s291 = smul.addr %s290, 4
          %s292 = scalar_lea.vmem [#allocation5], %s291
          %293 = dma.done %s289, 64
        $region48: #{tpu_custom_call.1} parent=43 // pred_fallthru
          _
      $region44: #{tpu_custom_call.1} parent=5 // pred_fallthru
        _
    $region6: #{tpu_custom_call.1} parent=1 // loop_footer
      %s19 = sadd.s32 1, %s15
    $region7: #{tpu_custom_call.1} parent=1 // loop_footer_branch
      %14 = sbr.rel target = $region3
    $region8: #{tpu_custom_call.1} parent=1 // loop_exit
      _
    %294 = vsyncpa [#allocation3], 1
    %s295 = scalar_lea.sflag [#allocation3], 1
    %296 = vsyncpa %s295, 1
    %297 = vsyncpa [#allocation4], 1
    %s298 = scalar_lea.sflag [#allocation4], 1
    %299 = vsyncpa %s298, 1

</llo_original>
